<compile_context>
chip_gen: v5e
topology: v5e:2x2
jax: 0.10.0
libtpu: 0.0.40
codegen_flags: <defaults>
</compile_context>

<pallas_src>
import functools

import jax
import jax.numpy as jnp
from jax.experimental import pallas as pl
from jax.experimental.pallas import tpu as pltpu

_LANES = 128


def autoencoder_kernel(
    x_ref,
    w1_ref, b1_ref,   # encoder layer 1: packed D -> H   (block-diag, (in, out))
    w2_ref, b2_ref,   # encoder layer 2: packed H -> Z
    w3_ref, b3_ref,   # decoder layer 1: packed Z -> H
    w4_ref, b4_ref,   # decoder layer 2: packed H -> D
    out_ref,
):
    wdt = w1_ref.dtype
    x = x_ref[...].astype(wdt)          # no-op when x already matches io dtype

    # ---- encode ----  (MXU accumulates in f32; bias-add / ReLU in f32)
    h1 = jnp.dot(x, w1_ref[...], preferred_element_type=jnp.float32) + b1_ref[...]
    h1 = jnp.maximum(h1, 0.0)
    z = jnp.dot(h1.astype(wdt), w2_ref[...],
                preferred_element_type=jnp.float32) + b2_ref[...]

    # ---- decode ----
    h2 = jnp.dot(z.astype(wdt), w3_ref[...],
                 preferred_element_type=jnp.float32) + b3_ref[...]
    h2 = jnp.maximum(h2, 0.0)
    xr = jnp.dot(h2.astype(wdt), w4_ref[...],
                 preferred_element_type=jnp.float32) + b4_ref[...]

    out_ref[...] = xr.astype(out_ref.dtype)


def pack_factor(d):
    """How many logical rows fit lane-dense in one 128-lane row."""
    return _LANES // d if (d < _LANES and _LANES % d == 0) else 1


def _block_diag(w, pack):
    """blockdiag(w, ..., w) with `pack` copies; w is (in, out)."""
    if pack == 1:
        return w
    din, dout = w.shape
    bd = jnp.zeros((pack * din, pack * dout), dtype=w.dtype)
    for p in range(pack):
        bd = bd.at[p * din:(p + 1) * din, p * dout:(p + 1) * dout].set(w)
    return bd


def prepare_params(params, *, io_dtype=jnp.float32, pack=1):
    """One-time parameter prep (outside the per-call path).

    Transposes PyTorch (out, in) weights to (in, out), expands them to
    block-diagonal form so `pack` packed rows go through one matmul, tiles the
    biases accordingly, and casts weights to io_dtype. Biases stay float32
    (bias-add / ReLU run in f32 even when I/O is bf16)."""
    prepped = []
    for W, b in params:
        w = jnp.asarray(W, dtype=jnp.float32).T
        w_bd = _block_diag(w, pack).astype(io_dtype)
        b_t = jnp.tile(jnp.asarray(b, dtype=jnp.float32).reshape(1, -1), (1, pack))
        prepped.append((w_bd, b_t))
    return tuple(prepped)


def autoencoder_forward(x, prepped_params, *, pack=1, tile_rows=8192):
    """Fused autoencoder forward.

    x: (B, D) array.
    prepped_params: output of prepare_params() (same `pack`).
    pack: rows packed per 128-lane row (lane-dense I/O).
    tile_rows: logical batch rows per grid step (large by default)."""
    (w1, b1), (w2, b2), (w3, b3), (w4, b4) = prepped_params
    B, D = x.shape
    io_dtype = w1.dtype

    dp = D * pack                 # packed feature width (128 when D divides 128)
    bp = -(-B // pack)            # packed rows (ceil)

    # --- batch tile in packed rows ---
    tile_bp = max(1, tile_rows // pack)
    tile_bp = min(tile_bp, bp)
    if bp >= 16:
        # Keep >= 2 grid steps so v7x's two TensorCores both get work.
        cap = max(8, (((bp + 1) // 2) // 8) * 8)
        tile_bp = min(tile_bp, cap)
    if tile_bp < bp:
        tile_bp = max(8, (tile_bp // 8) * 8)   # sublane-align partial tiles

    num_tiles = pl.cdiv(bp, tile_bp)
    rows_needed = num_tiles * tile_bp * pack
    if rows_needed != B:
        # TODO(synk): replace pad+slice with in-kernel tail masking for ragged B.
        x = jnp.pad(x, ((0, rows_needed - B), (0, 0)))

    # Pack 2 (or more) logical rows per 128-lane row; cast at the HBM boundary.
    xp = x.reshape(num_tiles * tile_bp, dp).astype(io_dtype)

    # x / out tiled over the batch grid; weights & biases use constant index
    # maps so they stay VMEM-resident across the whole grid.
    x_spec = pl.BlockSpec((tile_bp, dp), lambda i: (i, 0))
    out_spec = pl.BlockSpec((tile_bp, dp), lambda i: (i, 0))
    const2d = lambda a: pl.BlockSpec(a.shape, lambda i: (0, 0))
    weight_args = (w1, b1, w2, b2, w3, b3, w4, b4)

    out = pl.pallas_call(
        autoencoder_kernel,
        out_shape=jax.ShapeDtypeStruct(xp.shape, io_dtype),
        grid=(num_tiles,),
        in_specs=[x_spec] + [const2d(a) for a in weight_args],
        out_specs=out_spec,
        compiler_params=pltpu.CompilerParams(
            # Batch tiles are independent -> shard across TCs on v7x megacore.
            dimension_semantics=("parallel",),
            # Plenty of headroom on v5e/v6e (128 MiB) and v7x (64 MiB physical).
            vmem_limit_bytes=32 * 1024 * 1024,
        ),
    )(xp, *weight_args)

    out = out.reshape(rows_needed, D)
    if rows_needed != B:
        out = out[:B]
    return out


def init_linear(key, out_features, in_features):
    """Deterministic PyTorch-default-style init: U(-1/sqrt(fan_in), +1/sqrt(fan_in))."""
    kw, kb = jax.random.split(key)
    bound = 1.0 / jnp.sqrt(in_features)
    W = jax.random.uniform(kw, (out_features, in_features),
                           minval=-bound, maxval=bound, dtype=jnp.float32)
    b = jax.random.uniform(kb, (out_features,),
                           minval=-bound, maxval=bound, dtype=jnp.float32)
    return W, b


def reference_forward(x, params):
    """Pure-JAX reference matching the PyTorch nn.Sequential forward."""
    (W1, b1), (W2, b2), (W3, b3), (W4, b4) = params
    h = jnp.maximum(x @ W1.T + b1, 0.0)
    z = h @ W2.T + b2
    h = jnp.maximum(z @ W3.T + b3, 0.0)
    return h @ W4.T + b4


if __name__ == "__main__":
    key = jax.random.PRNGKey(0)
    k_x, k1, k2, k3, k4 = jax.random.split(key, 5)

    # Small shapes: batch=32, input dim=64, hidden=32, latent=16.
    B, D, H, Z = 32, 64, 32, 16
    x = jax.random.normal(k_x, (B, D), dtype=jnp.float32)

    params = (
        init_linear(k1, H, D),   # encoder Linear(D -> H)
        init_linear(k2, Z, H),   # encoder Linear(H -> Z)
        init_linear(k3, H, Z),   # decoder Linear(Z -> H)
        init_linear(k4, D, H),   # decoder Linear(H -> D)
    )
    ref = reference_forward(x, params)

    pack = pack_factor(D)        # 2 for D=64 -> 128-lane packed rows

    # ---- f32 I/O path ----
    prepped_f32 = prepare_params(params, io_dtype=jnp.float32, pack=pack)
    fwd_f32 = jax.jit(functools.partial(autoencoder_forward, pack=pack))
    out_f32 = fwd_f32(x, prepped_f32)
    jax.block_until_ready(out_f32)
    assert out_f32.shape == (B, D)
    assert jnp.allclose(out_f32, ref, atol=1e-4, rtol=1e-4)

    # ---- bf16-at-the-HBM-boundary path (halves HBM traffic; mem-bound win) ----
    prepped_bf16 = prepare_params(params, io_dtype=jnp.bfloat16, pack=pack)
    fwd_bf16 = jax.jit(functools.partial(autoencoder_forward, pack=pack))
    out_bf16 = fwd_bf16(x.astype(jnp.bfloat16), prepped_bf16)
    jax.block_until_ready(out_bf16)
    assert out_bf16.shape == (B, D)
    assert jnp.allclose(out_bf16.astype(jnp.float32), ref, atol=6e-2, rtol=6e-2)

    print("KERNEL_OK")
</pallas_src>

<mosaic_0001>
module attributes {stable_mosaic.version = 11 : i64} {
  func.func @autoencoder_kernel(%arg0: i32, %arg1: memref<8x128xf32, #tpu.memory_space<vmem>>, %arg2: memref<128x64xf32, #tpu.memory_space<vmem>>, %arg3: memref<1x64xf32, #tpu.memory_space<vmem>>, %arg4: memref<64x32xf32, #tpu.memory_space<vmem>>, %arg5: memref<1x32xf32, #tpu.memory_space<vmem>>, %arg6: memref<32x64xf32, #tpu.memory_space<vmem>>, %arg7: memref<1x64xf32, #tpu.memory_space<vmem>>, %arg8: memref<64x128xf32, #tpu.memory_space<vmem>>, %arg9: memref<1x128xf32, #tpu.memory_space<vmem>>, %arg10: memref<8x128xf32, #tpu.memory_space<vmem>>) attributes {dimension_semantics = [#tpu.dimension_semantics<parallel>], iteration_bounds = array<i64: 2>, scalar_prefetch = 0 : i64, scratch_operands = 0 : i64, tpu.core_type = #tpu.core_type<tc>, window_params = [{transform_indices = @transform_0, window_bounds = array<i64: 8, 128>}, {pipeline_mode = #tpu.pipeline_mode<synchronous>, transform_indices = @transform_1, window_bounds = array<i64: 128, 64>}, {pipeline_mode = #tpu.pipeline_mode<synchronous>, transform_indices = @transform_2, window_bounds = array<i64: 1, 64>}, {pipeline_mode = #tpu.pipeline_mode<synchronous>, transform_indices = @transform_3, window_bounds = array<i64: 64, 32>}, {pipeline_mode = #tpu.pipeline_mode<synchronous>, transform_indices = @transform_4, window_bounds = array<i64: 1, 32>}, {pipeline_mode = #tpu.pipeline_mode<synchronous>, transform_indices = @transform_5, window_bounds = array<i64: 32, 64>}, {pipeline_mode = #tpu.pipeline_mode<synchronous>, transform_indices = @transform_6, window_bounds = array<i64: 1, 64>}, {pipeline_mode = #tpu.pipeline_mode<synchronous>, transform_indices = @transform_7, window_bounds = array<i64: 64, 128>}, {pipeline_mode = #tpu.pipeline_mode<synchronous>, transform_indices = @transform_8, window_bounds = array<i64: 1, 128>}, {transform_indices = @transform_9, window_bounds = array<i64: 8, 128>}]} {
    %c0 = arith.constant 0 : index
    %c0_0 = arith.constant 0 : index
    %0 = vector.load %arg1[%c0, %c0_0] : memref<8x128xf32, #tpu.memory_space<vmem>>, vector<8x128xf32>
    %c0_1 = arith.constant 0 : index
    %c0_2 = arith.constant 0 : index
    %1 = vector.load %arg2[%c0_1, %c0_2] : memref<128x64xf32, #tpu.memory_space<vmem>>, vector<128x64xf32>
    %cst = arith.constant dense<0.000000e+00> : vector<8x64xf32>
    %2 = tpu.matmul %0, %1, %cst {dimension_numbers = #tpu.dot_dimension_numbers<[1], [0], [0], [1], [0, 0, 1, 1], [], []>} : vector<8x128xf32>, vector<128x64xf32>, vector<8x64xf32> -> vector<8x64xf32>
    %c0_3 = arith.constant 0 : index
    %c0_4 = arith.constant 0 : index
    %3 = vector.load %arg3[%c0_3, %c0_4] : memref<1x64xf32, #tpu.memory_space<vmem>>, vector<1x64xf32>
    %4 = vector.broadcast %3 : vector<1x64xf32> to vector<8x64xf32>
    %5 = arith.addf %2, %4 : vector<8x64xf32>
    %cst_5 = arith.constant 0.000000e+00 : f32
    %6 = vector.broadcast %cst_5 : f32 to vector<8x64xf32>
    %7 = arith.maximumf %5, %6 : vector<8x64xf32>
    %c0_6 = arith.constant 0 : index
    %c0_7 = arith.constant 0 : index
    %8 = vector.load %arg4[%c0_6, %c0_7] : memref<64x32xf32, #tpu.memory_space<vmem>>, vector<64x32xf32>
    %cst_8 = arith.constant dense<0.000000e+00> : vector<8x32xf32>
    %9 = tpu.matmul %7, %8, %cst_8 {dimension_numbers = #tpu.dot_dimension_numbers<[1], [0], [0], [1], [0, 0, 1, 1], [], []>} : vector<8x64xf32>, vector<64x32xf32>, vector<8x32xf32> -> vector<8x32xf32>
    %c0_9 = arith.constant 0 : index
    %c0_10 = arith.constant 0 : index
    %10 = vector.load %arg5[%c0_9, %c0_10] : memref<1x32xf32, #tpu.memory_space<vmem>>, vector<1x32xf32>
    %11 = vector.broadcast %10 : vector<1x32xf32> to vector<8x32xf32>
    %12 = arith.addf %9, %11 : vector<8x32xf32>
    %c0_11 = arith.constant 0 : index
    %c0_12 = arith.constant 0 : index
    %13 = vector.load %arg6[%c0_11, %c0_12] : memref<32x64xf32, #tpu.memory_space<vmem>>, vector<32x64xf32>
    %cst_13 = arith.constant dense<0.000000e+00> : vector<8x64xf32>
    %14 = tpu.matmul %12, %13, %cst_13 {dimension_numbers = #tpu.dot_dimension_numbers<[1], [0], [0], [1], [0, 0, 1, 1], [], []>} : vector<8x32xf32>, vector<32x64xf32>, vector<8x64xf32> -> vector<8x64xf32>
    %c0_14 = arith.constant 0 : index
    %c0_15 = arith.constant 0 : index
    %15 = vector.load %arg7[%c0_14, %c0_15] : memref<1x64xf32, #tpu.memory_space<vmem>>, vector<1x64xf32>
    %16 = vector.broadcast %15 : vector<1x64xf32> to vector<8x64xf32>
    %17 = arith.addf %14, %16 : vector<8x64xf32>
    %cst_16 = arith.constant 0.000000e+00 : f32
    %18 = vector.broadcast %cst_16 : f32 to vector<8x64xf32>
    %19 = arith.maximumf %17, %18 : vector<8x64xf32>
    %c0_17 = arith.constant 0 : index
    %c0_18 = arith.constant 0 : index
    %20 = vector.load %arg8[%c0_17, %c0_18] : memref<64x128xf32, #tpu.memory_space<vmem>>, vector<64x128xf32>
    %cst_19 = arith.constant dense<0.000000e+00> : vector<8x128xf32>
    %21 = tpu.matmul %19, %20, %cst_19 {dimension_numbers = #tpu.dot_dimension_numbers<[1], [0], [0], [1], [0, 0, 1, 1], [], []>} : vector<8x64xf32>, vector<64x128xf32>, vector<8x128xf32> -> vector<8x128xf32>
    %c0_20 = arith.constant 0 : index
    %c0_21 = arith.constant 0 : index
    %22 = vector.load %arg9[%c0_20, %c0_21] : memref<1x128xf32, #tpu.memory_space<vmem>>, vector<1x128xf32>
    %23 = vector.broadcast %22 : vector<1x128xf32> to vector<8x128xf32>
    %24 = arith.addf %21, %23 : vector<8x128xf32>
    %c0_22 = arith.constant 0 : index
    %c0_23 = arith.constant 0 : index
    %25 = vector.load %arg10[%c0_22, %c0_23] : memref<8x128xf32, #tpu.memory_space<vmem>>, vector<8x128xf32>
    tpu.vector_store %arg10[%c0_22, %c0_23], %24 {strides = array<i32>} : memref<8x128xf32, #tpu.memory_space<vmem>>, vector<8x128xf32>,
    return
  }
  func.func @transform_0(%arg0: i32) -> (i32, i32) {
    %c0_i32 = arith.constant 0 : i32
    %c0_i32_0 = arith.constant 0 : i32
    return %arg0, %c0_i32 : i32, i32
  }
  func.func @transform_1(%arg0: i32) -> (i32, i32) {
    %c0_i32 = arith.constant 0 : i32
    %c0_i32_0 = arith.constant 0 : i32
    %c0_i32_1 = arith.constant 0 : i32
    return %c0_i32, %c0_i32_0 : i32, i32
  }
  func.func @transform_2(%arg0: i32) -> (i32, i32) {
    %c0_i32 = arith.constant 0 : i32
    %c0_i32_0 = arith.constant 0 : i32
    %c0_i32_1 = arith.constant 0 : i32
    return %c0_i32, %c0_i32_0 : i32, i32
  }
  func.func @transform_3(%arg0: i32) -> (i32, i32) {
    %c0_i32 = arith.constant 0 : i32
    %c0_i32_0 = arith.constant 0 : i32
    %c0_i32_1 = arith.constant 0 : i32
    return %c0_i32, %c0_i32_0 : i32, i32
  }
  func.func @transform_4(%arg0: i32) -> (i32, i32) {
    %c0_i32 = arith.constant 0 : i32
    %c0_i32_0 = arith.constant 0 : i32
    %c0_i32_1 = arith.constant 0 : i32
    return %c0_i32, %c0_i32_0 : i32, i32
  }
  func.func @transform_5(%arg0: i32) -> (i32, i32) {
    %c0_i32 = arith.constant 0 : i32
    %c0_i32_0 = arith.constant 0 : i32
    %c0_i32_1 = arith.constant 0 : i32
    return %c0_i32, %c0_i32_0 : i32, i32
  }
  func.func @transform_6(%arg0: i32) -> (i32, i32) {
    %c0_i32 = arith.constant 0 : i32
    %c0_i32_0 = arith.constant 0 : i32
    %c0_i32_1 = arith.constant 0 : i32
    return %c0_i32, %c0_i32_0 : i32, i32
  }
  func.func @transform_7(%arg0: i32) -> (i32, i32) {
    %c0_i32 = arith.constant 0 : i32
    %c0_i32_0 = arith.constant 0 : i32
    %c0_i32_1 = arith.constant 0 : i32
    return %c0_i32, %c0_i32_0 : i32, i32
  }
  func.func @transform_8(%arg0: i32) -> (i32, i32) {
    %c0_i32 = arith.constant 0 : i32
    %c0_i32_0 = arith.constant 0 : i32
    %c0_i32_1 = arith.constant 0 : i32
    return %c0_i32, %c0_i32_0 : i32, i32
  }
  func.func @transform_9(%arg0: i32) -> (i32, i32) {
    %c0_i32 = arith.constant 0 : i32
    %c0_i32_0 = arith.constant 0 : i32
    return %arg0, %c0_i32 : i32, i32
  }
}

</mosaic_0001>

<llo_original>
// kernel: autoencoder_forward.1
$region0: #{autoencoder_forward.1}
  #allocation0 [shape = 'u32[]', space=smem, size = 0x4, offset = 0x4, fixed_abs, tag = 'smem constant byte address 0x4 - core index']
  #allocation1 [shape = 'u32[72,128]{1,0:T(1,128)}', space=vmem, size = 0x9000, scoped, tag = 'internal scratch']
  %s0 = inlined_call_operand.vmem [shape: f32[16,128], index: 0, kind: input, shape index: {}]
  %s1 = inlined_call_operand.vmem [shape: f32[128,64], index: 1, kind: input, shape index: {}]
  %s2 = inlined_call_operand.vmem [shape: f32[1,64], index: 2, kind: input, shape index: {}]
  %s3 = inlined_call_operand.vmem [shape: f32[64,32], index: 3, kind: input, shape index: {}]
  %s4 = inlined_call_operand.vmem [shape: f32[1,32], index: 4, kind: input, shape index: {}]
  %s5 = inlined_call_operand.vmem [shape: f32[32,64], index: 5, kind: input, shape index: {}]
  %s6 = inlined_call_operand.vmem [shape: f32[1,64], index: 6, kind: input, shape index: {}]
  %s7 = inlined_call_operand.vmem [shape: f32[64,128], index: 7, kind: input, shape index: {}]
  %s8 = inlined_call_operand.vmem [shape: f32[1,128], index: 8, kind: input, shape index: {}]
  %s9 = inlined_call_operand.vmem [shape: f32[16,128], index: 9, kind: output, shape index: {}]
  %s10 = sld [smem:[#allocation0]]
  $region69: #{autoencoder_forward.1} parent=0
    _
  %s12 = ssub.s32 1, %s10
  %s13 = scalar_select 0, %s12, %s10
  loop: start=0, step=1, limit=4
  $region2: #{autoencoder_forward.1} parent=0 // loop_pre_header
    _
  $region3: #{autoencoder_forward.1} parent=0 // loop_header
    %s15 = sphi 0, %s19
    %p16 = scmp.ge.s32.totalorder %s15, 4
    %s25 = sphi 0, %s27
    %s28 = sphi 0, %s25
    %s29 = sphi 0, %s28
    %s45 = sphi 0, %s29
    %s49 = sphi 0, %s49
    %s51 = sphi 0, %s49
    %s52 = sphi 0, %s51
    %s66 = sphi 0, %s52
    %s70 = sphi 0, %s70
    %s72 = sphi 0, %s70
    %s73 = sphi 0, %s72
    %s87 = sphi 0, %s73
    %s91 = sphi 0, %s91
    %s93 = sphi 0, %s91
    %s94 = sphi 0, %s93
    %s108 = sphi 0, %s94
    %s112 = sphi 0, %s112
    %s114 = sphi 0, %s112
    %s115 = sphi 0, %s114
    %s129 = sphi 0, %s115
    %s133 = sphi 0, %s133
    %s135 = sphi 0, %s133
    %s136 = sphi 0, %s135
    %s150 = sphi 0, %s136
    %s154 = sphi 0, %s154
    %s156 = sphi 0, %s154
    %s157 = sphi 0, %s156
    %s171 = sphi 0, %s157
    %s175 = sphi 0, %s175
    %s177 = sphi 0, %s175
    %s178 = sphi 0, %s177
    %s192 = sphi 0, %s178
    %s196 = sphi 0, %s196
    %s198 = sphi 0, %s196
    %s199 = sphi 0, %s198
    %s213 = sphi 0, %s199
    %s219 = sphi 0, %s221
    %s222 = sphi 0, %s219
    %s223 = sphi 0, %s222
    %s239 = sphi 0, %s223
  $region4: #{autoencoder_forward.1} parent=0 // loop_header_branch
    %18 = sbr.rel (%p16) target = $region8
  $region5: #{autoencoder_forward.1} parent=0 // loop_body
    %s20 = ssub.s32 %s15, 1
    %s21 = ssub.s32 %s15, 2
    %s22 = sadd.s32 %s15, 1
    %s23 = ssub.s32 %s15, %s22
    %p24 = scmp.eq.s32.totalorder %s23, 0
    %s26 = sadd.s32 %s25, 1
    %s27 = scalar_select %p24, %s25, %s26
    %p30 = pneg %p24
    %p31 = scmp.eq.s32.totalorder %s15, 1
    %p32 = por %p30, %p31
    %p33 = scmp.ne.s32.totalorder %s25, %s28
    %p34 = scmp.eq.s32.totalorder %s15, 0
    %p35 = por %p33, %p34
    %p36 = scmp.ne.s32.totalorder %s25, %s28
    %p37 = scmp.eq.s32.totalorder %s20, 1
    %p38 = por %p36, %p37
    %p39 = scmp.ne.s32.totalorder %s28, %s29
    %p40 = scmp.eq.s32.totalorder %s20, 0
    %p41 = por %p39, %p40
    %p42 = scmp.ne.s32.totalorder %s28, %s29
    %p43 = scmp.eq.s32.totalorder %s21, 1
    %p44 = por %p42, %p43
    %p46 = scmp.ne.s32.totalorder %s29, %s45
    %p47 = scmp.eq.s32.totalorder %s21, 0
    %p48 = por %p46, %p47
    %s50 = sadd.s32 %s49, 1
    %p53 = scmp.eq.s32.totalorder %s15, 1
    %p54 = scmp.ne.s32.totalorder %s49, %s51
    %p55 = scmp.eq.s32.totalorder %s15, 0
    %p56 = por %p54, %p55
    %p57 = scmp.ne.s32.totalorder %s49, %s51
    %p58 = scmp.eq.s32.totalorder %s20, 1
    %p59 = por %p57, %p58
    %p60 = scmp.ne.s32.totalorder %s51, %s52
    %p61 = scmp.eq.s32.totalorder %s20, 0
    %p62 = por %p60, %p61
    %p63 = scmp.ne.s32.totalorder %s51, %s52
    %p64 = scmp.eq.s32.totalorder %s21, 1
    %p65 = por %p63, %p64
    %p67 = scmp.ne.s32.totalorder %s52, %s66
    %p68 = scmp.eq.s32.totalorder %s21, 0
    %p69 = por %p67, %p68
    %s71 = sadd.s32 %s70, 1
    %p74 = scmp.eq.s32.totalorder %s15, 1
    %p75 = scmp.ne.s32.totalorder %s70, %s72
    %p76 = scmp.eq.s32.totalorder %s15, 0
    %p77 = por %p75, %p76
    %p78 = scmp.ne.s32.totalorder %s70, %s72
    %p79 = scmp.eq.s32.totalorder %s20, 1
    %p80 = por %p78, %p79
    %p81 = scmp.ne.s32.totalorder %s72, %s73
    %p82 = scmp.eq.s32.totalorder %s20, 0
    %p83 = por %p81, %p82
    %p84 = scmp.ne.s32.totalorder %s72, %s73
    %p85 = scmp.eq.s32.totalorder %s21, 1
    %p86 = por %p84, %p85
    %p88 = scmp.ne.s32.totalorder %s73, %s87
    %p89 = scmp.eq.s32.totalorder %s21, 0
    %p90 = por %p88, %p89
    %s92 = sadd.s32 %s91, 1
    %p95 = scmp.eq.s32.totalorder %s15, 1
    %p96 = scmp.ne.s32.totalorder %s91, %s93
    %p97 = scmp.eq.s32.totalorder %s15, 0
    %p98 = por %p96, %p97
    %p99 = scmp.ne.s32.totalorder %s91, %s93
    %p100 = scmp.eq.s32.totalorder %s20, 1
    %p101 = por %p99, %p100
    %p102 = scmp.ne.s32.totalorder %s93, %s94
    %p103 = scmp.eq.s32.totalorder %s20, 0
    %p104 = por %p102, %p103
    %p105 = scmp.ne.s32.totalorder %s93, %s94
    %p106 = scmp.eq.s32.totalorder %s21, 1
    %p107 = por %p105, %p106
    %p109 = scmp.ne.s32.totalorder %s94, %s108
    %p110 = scmp.eq.s32.totalorder %s21, 0
    %p111 = por %p109, %p110
    %s113 = sadd.s32 %s112, 1
    %p116 = scmp.eq.s32.totalorder %s15, 1
    %p117 = scmp.ne.s32.totalorder %s112, %s114
    %p118 = scmp.eq.s32.totalorder %s15, 0
    %p119 = por %p117, %p118
    %p120 = scmp.ne.s32.totalorder %s112, %s114
    %p121 = scmp.eq.s32.totalorder %s20, 1
    %p122 = por %p120, %p121
    %p123 = scmp.ne.s32.totalorder %s114, %s115
    %p124 = scmp.eq.s32.totalorder %s20, 0
    %p125 = por %p123, %p124
    %p126 = scmp.ne.s32.totalorder %s114, %s115
    %p127 = scmp.eq.s32.totalorder %s21, 1
    %p128 = por %p126, %p127
    %p130 = scmp.ne.s32.totalorder %s115, %s129
    %p131 = scmp.eq.s32.totalorder %s21, 0
    %p132 = por %p130, %p131
    %s134 = sadd.s32 %s133, 1
    %p137 = scmp.eq.s32.totalorder %s15, 1
    %p138 = scmp.ne.s32.totalorder %s133, %s135
    %p139 = scmp.eq.s32.totalorder %s15, 0
    %p140 = por %p138, %p139
    %p141 = scmp.ne.s32.totalorder %s133, %s135
    %p142 = scmp.eq.s32.totalorder %s20, 1
    %p143 = por %p141, %p142
    %p144 = scmp.ne.s32.totalorder %s135, %s136
    %p145 = scmp.eq.s32.totalorder %s20, 0
    %p146 = por %p144, %p145
    %p147 = scmp.ne.s32.totalorder %s135, %s136
    %p148 = scmp.eq.s32.totalorder %s21, 1
    %p149 = por %p147, %p148
    %p151 = scmp.ne.s32.totalorder %s136, %s150
    %p152 = scmp.eq.s32.totalorder %s21, 0
    %p153 = por %p151, %p152
    %s155 = sadd.s32 %s154, 1
    %p158 = scmp.eq.s32.totalorder %s15, 1
    %p159 = scmp.ne.s32.totalorder %s154, %s156
    %p160 = scmp.eq.s32.totalorder %s15, 0
    %p161 = por %p159, %p160
    %p162 = scmp.ne.s32.totalorder %s154, %s156
    %p163 = scmp.eq.s32.totalorder %s20, 1
    %p164 = por %p162, %p163
    %p165 = scmp.ne.s32.totalorder %s156, %s157
    %p166 = scmp.eq.s32.totalorder %s20, 0
    %p167 = por %p165, %p166
    %p168 = scmp.ne.s32.totalorder %s156, %s157
    %p169 = scmp.eq.s32.totalorder %s21, 1
    %p170 = por %p168, %p169
    %p172 = scmp.ne.s32.totalorder %s157, %s171
    %p173 = scmp.eq.s32.totalorder %s21, 0
    %p174 = por %p172, %p173
    %s176 = sadd.s32 %s175, 1
    %p179 = scmp.eq.s32.totalorder %s15, 1
    %p180 = scmp.ne.s32.totalorder %s175, %s177
    %p181 = scmp.eq.s32.totalorder %s15, 0
    %p182 = por %p180, %p181
    %p183 = scmp.ne.s32.totalorder %s175, %s177
    %p184 = scmp.eq.s32.totalorder %s20, 1
    %p185 = por %p183, %p184
    %p186 = scmp.ne.s32.totalorder %s177, %s178
    %p187 = scmp.eq.s32.totalorder %s20, 0
    %p188 = por %p186, %p187
    %p189 = scmp.ne.s32.totalorder %s177, %s178
    %p190 = scmp.eq.s32.totalorder %s21, 1
    %p191 = por %p189, %p190
    %p193 = scmp.ne.s32.totalorder %s178, %s192
    %p194 = scmp.eq.s32.totalorder %s21, 0
    %p195 = por %p193, %p194
    %s197 = sadd.s32 %s196, 1
    %p200 = scmp.eq.s32.totalorder %s15, 1
    %p201 = scmp.ne.s32.totalorder %s196, %s198
    %p202 = scmp.eq.s32.totalorder %s15, 0
    %p203 = por %p201, %p202
    %p204 = scmp.ne.s32.totalorder %s196, %s198
    %p205 = scmp.eq.s32.totalorder %s20, 1
    %p206 = por %p204, %p205
    %p207 = scmp.ne.s32.totalorder %s198, %s199
    %p208 = scmp.eq.s32.totalorder %s20, 0
    %p209 = por %p207, %p208
    %p210 = scmp.ne.s32.totalorder %s198, %s199
    %p211 = scmp.eq.s32.totalorder %s21, 1
    %p212 = por %p210, %p211
    %p214 = scmp.ne.s32.totalorder %s199, %s213
    %p215 = scmp.eq.s32.totalorder %s21, 0
    %p216 = por %p214, %p215
    %s217 = ssub.s32 %s15, %s22
    %p218 = scmp.eq.s32.totalorder %s217, 0
    %s220 = sadd.s32 %s219, 1
    %s221 = scalar_select %p218, %s219, %s220
    %p224 = pneg %p218
    %p225 = scmp.eq.s32.totalorder %s15, 1
    %p226 = por %p224, %p225
    %p227 = scmp.ne.s32.totalorder %s219, %s222
    %p228 = scmp.eq.s32.totalorder %s15, 0
    %p229 = por %p227, %p228
    %p230 = scmp.ne.s32.totalorder %s219, %s222
    %p231 = scmp.eq.s32.totalorder %s20, 1
    %p232 = por %p230, %p231
    %p233 = scmp.ne.s32.totalorder %s222, %s223
    %p234 = scmp.eq.s32.totalorder %s20, 0
    %p235 = por %p233, %p234
    %p236 = scmp.ne.s32.totalorder %s222, %s223
    %p237 = scmp.eq.s32.totalorder %s21, 1
    %p238 = por %p236, %p237
    %p240 = scmp.ne.s32.totalorder %s223, %s239
    %p241 = scmp.eq.s32.totalorder %s21, 0
    %p242 = por %p240, %p241
    %p243 = scmp.le.s32.totalorder 1, %s15
    %p244 = scmp.lt.s32.totalorder %s15, 3
    %p245 = pnand %p243, %p244
    %p246 = pneg %p245
    // Predicated region
    $region9: #{autoencoder_forward.1} parent=5 // pred_check
      _
    $region10: #{autoencoder_forward.1} parent=5 // pred_check_branch
      %248 = sbr.rel (%p245) target = $region12
    $region11: #{autoencoder_forward.1} parent=5 // pred_region
      %s249 = ssub.s32 %s15, 1
      // Predicated region
      $region13: #{autoencoder_forward.1} parent=11 // pred_check
        %p250 = pneg %p62
      $region14: #{autoencoder_forward.1} parent=11 // pred_check_branch
        %252 = sbr.rel (%p250) target = $region16
      $region15: #{autoencoder_forward.1} parent=11 // pred_region
        _
      $region16: #{autoencoder_forward.1} parent=11 // pred_fallthru
        _
      // Predicated region
      $region17: #{autoencoder_forward.1} parent=11 // pred_check
        %p253 = pneg %p83
      $region18: #{autoencoder_forward.1} parent=11 // pred_check_branch
        %255 = sbr.rel (%p253) target = $region20
      $region19: #{autoencoder_forward.1} parent=11 // pred_region
        _
      $region20: #{autoencoder_forward.1} parent=11 // pred_fallthru
        _
      // Predicated region
      $region21: #{autoencoder_forward.1} parent=11 // pred_check
        %p256 = pneg %p104
      $region22: #{autoencoder_forward.1} parent=11 // pred_check_branch
        %258 = sbr.rel (%p256) target = $region24
      $region23: #{autoencoder_forward.1} parent=11 // pred_region
        _
      $region24: #{autoencoder_forward.1} parent=11 // pred_fallthru
        _
      // Predicated region
      $region25: #{autoencoder_forward.1} parent=11 // pred_check
        %p259 = pneg %p125
      $region26: #{autoencoder_forward.1} parent=11 // pred_check_branch
        %261 = sbr.rel (%p259) target = $region28
      $region27: #{autoencoder_forward.1} parent=11 // pred_region
        _
      $region28: #{autoencoder_forward.1} parent=11 // pred_fallthru
        _
      // Predicated region
      $region29: #{autoencoder_forward.1} parent=11 // pred_check
        %p262 = pneg %p146
      $region30: #{autoencoder_forward.1} parent=11 // pred_check_branch
        %264 = sbr.rel (%p262) target = $region32
      $region31: #{autoencoder_forward.1} parent=11 // pred_region
        _
      $region32: #{autoencoder_forward.1} parent=11 // pred_fallthru
        _
      // Predicated region
      $region33: #{autoencoder_forward.1} parent=11 // pred_check
        %p265 = pneg %p167
      $region34: #{autoencoder_forward.1} parent=11 // pred_check_branch
        %267 = sbr.rel (%p265) target = $region36
      $region35: #{autoencoder_forward.1} parent=11 // pred_region
        _
      $region36: #{autoencoder_forward.1} parent=11 // pred_fallthru
        _
      // Predicated region
      $region37: #{autoencoder_forward.1} parent=11 // pred_check
        %p268 = pneg %p188
      $region38: #{autoencoder_forward.1} parent=11 // pred_check_branch
        %270 = sbr.rel (%p268) target = $region40
      $region39: #{autoencoder_forward.1} parent=11 // pred_region
        _
      $region40: #{autoencoder_forward.1} parent=11 // pred_fallthru
        _
      // Predicated region
      $region41: #{autoencoder_forward.1} parent=11 // pred_check
        %p271 = pneg %p209
      $region42: #{autoencoder_forward.1} parent=11 // pred_check_branch
        %273 = sbr.rel (%p271) target = $region44
      $region43: #{autoencoder_forward.1} parent=11 // pred_region
        _
      $region44: #{autoencoder_forward.1} parent=11 // pred_fallthru
        _
    $region12: #{autoencoder_forward.1} parent=5 // pred_fallthru
      _
    %p274 = scmp.lt.s32.totalorder %s15, 2
    // Predicated region
    $region45: #{autoencoder_forward.1} parent=5 // pred_check
      %p275 = pneg %p274
    $region46: #{autoencoder_forward.1} parent=5 // pred_check_branch
      %277 = sbr.rel (%p275) target = $region48
    $region47: #{autoencoder_forward.1} parent=5 // pred_region
      // Predicated region
      $region49: #{autoencoder_forward.1} parent=47 // pred_check
        %p278 = pneg %p35
      $region50: #{autoencoder_forward.1} parent=47 // pred_check_branch
        %280 = sbr.rel (%p278) target = $region52
      $region51: #{autoencoder_forward.1} parent=47 // pred_region
        %p281 = scmp.lt.s32.totalorder %s15, 1
        %s282 = scalar_select %p281, %s15, 1
        %s283 = smul.addr %s282, 8
        %s284 = scalar_lea.vmem %s0, %s283
      $region52: #{autoencoder_forward.1} parent=47 // pred_fallthru
        _
    $region48: #{autoencoder_forward.1} parent=5 // pred_fallthru
      _
    %p285 = scmp.le.s32.totalorder 1, %s15
    %p286 = scmp.lt.s32.totalorder %s15, 3
    %p287 = pnand %p285, %p286
    %p288 = pneg %p287
    // Predicated region
    $region53: #{autoencoder_forward.1} parent=5 // pred_check
      _
    $region54: #{autoencoder_forward.1} parent=5 // pred_check_branch
      %290 = sbr.rel (%p287) target = $region56
    $region55: #{autoencoder_forward.1} parent=5 // pred_region
      %s291 = ssub.s32 %s15, 1
      %p292 = scmp.lt.s32.totalorder %s20, 1
      %s293 = scalar_select %p292, %s20, 1
      %s294 = smul.addr %s293, 8
      %s295 = scalar_lea.vmem %s0, %s294
      %p296 = pneg %p41
      %p297 = pneg %p38
      %p298 = pneg %p62
      %p299 = pneg %p59
      %p300 = pneg %p83
      %p301 = pneg %p80
      %p302 = pneg %p104
      %p303 = pneg %p101
      %p304 = pneg %p125
      %p305 = pneg %p122
      %p306 = pneg %p146
      %p307 = pneg %p143
      %p308 = pneg %p167
      %p309 = pneg %p164
      %p310 = pneg %p188
      %p311 = pneg %p185
      %p312 = pneg %p209
      %p313 = pneg %p206
      %p314 = pneg %p235
      %p315 = pneg %p232
      %p316 = scmp.lt.s32.totalorder %s20, 1
      %s317 = scalar_select %p316, %s20, 1
      %s318 = smul.addr %s317, 8
      %s319 = scalar_lea.vmem %s9, %s318
      %p320 = scmp.lt.s32.totalorder %s20, 1
      %s321 = scalar_select %p320, %s20, 1
      %s322 = smul.addr %s321, 8
      %s323 = scalar_lea.vmem %s0, %s322
      %p324 = scmp.lt.s32.totalorder %s20, 1
      %s325 = scalar_select %p324, %s20, 1
      %s326 = smul.addr %s325, 8
      %s327 = scalar_lea.vmem %s9, %s326
      %v328 = vld [vmem:[%s323] sm:$0xff]
      %v329 = vld [vmem:[%s1] sm:$0xff]
      %v330 = vld [vmem:[%s1 + $0x8] sm:$0xff]
      %v331 = vld [vmem:[%s1 + $0x10] sm:$0xff]
      %v332 = vld [vmem:[%s1 + $0x18] sm:$0xff]
      %v333 = vld [vmem:[%s1 + $0x20] sm:$0xff]
      %v334 = vld [vmem:[%s1 + $0x28] sm:$0xff]
      %v335 = vld [vmem:[%s1 + $0x30] sm:$0xff]
      %v336 = vld [vmem:[%s1 + $0x38] sm:$0xff]
      %v337 = vld [vmem:[%s1 + $0x40] sm:$0xff]
      %v338 = vld [vmem:[%s1 + $0x48] sm:$0xff]
      %v339 = vld [vmem:[%s1 + $0x50] sm:$0xff]
      %v340 = vld [vmem:[%s1 + $0x58] sm:$0xff]
      %v341 = vld [vmem:[%s1 + $0x60] sm:$0xff]
      %v342 = vld [vmem:[%s1 + $0x68] sm:$0xff]
      %v343 = vld [vmem:[%s1 + $0x70] sm:$0xff]
      %v344 = vld [vmem:[%s1 + $0x78] sm:$0xff]
      %v345 = vld [vmem:[%s2] sm:$0x1]
      %v347 = vperm.slane %v345, 0
      %349 = vmatpush.msra.mxu0 %v344
      %350 = vmatpush.msra.mxu0 %v343
      %351 = vmatpush.msra.mxu0 %v342
      %352 = vmatpush.msra.mxu0 %v341
      %353 = vmatpush.msra.mxu0 %v340
      %354 = vmatpush.msra.mxu0 %v339
      %355 = vmatpush.msra.mxu0 %v338
      %356 = vmatpush.msra.mxu0 %v337
      %357 = vmatpush.msra.mxu0 %v336
      %358 = vmatpush.msra.mxu0 %v335
      %359 = vmatpush.msra.mxu0 %v334
      %360 = vmatpush.msra.mxu0 %v333
      %361 = vmatpush.msra.mxu0 %v332
      %362 = vmatpush.msra.mxu0 %v331
      %363 = vmatpush.msra.mxu0 %v330
      %364 = vmatpush.msra.mxu0 %v329
      %365 = vmatmul.f32.gmra.mxu0 %v328
      %v366 = vpop.f32.mrf.mxu0
      %v367 = vadd.f32 %v347, %v366
      %368 = vdwg.mxu0
      %v369 = vmax.f32 %v367, 0.0
      %v370 = vld [vmem:[%s3] sm:$0xff]
      %v371 = vld [vmem:[%s3 + $0x8] sm:$0xff]
      %v372 = vld [vmem:[%s3 + $0x10] sm:$0xff]
      %v373 = vld [vmem:[%s3 + $0x18] sm:$0xff]
      %v374 = vld [vmem:[%s3 + $0x20] sm:$0xff]
      %v375 = vld [vmem:[%s3 + $0x28] sm:$0xff]
      %v376 = vld [vmem:[%s3 + $0x30] sm:$0xff]
      %v377 = vld [vmem:[%s3 + $0x38] sm:$0xff]
      %v378 = vld [vmem:[%s4] sm:$0x1]
      %v380 = vperm.slane %v378, 0
      %vm382 = vcmask 523264
      %v384 = vsel %vm382, %v369, 0
      %386 = vmatpush.msra.mxu0 0.0
      %387 = vmatpush.msra.mxu0 0.0
      %388 = vmatpush.msra.mxu0 0.0
      %389 = vmatpush.msra.mxu0 0.0
      %390 = vmatpush.msra.mxu0 0.0
      %391 = vmatpush.msra.mxu0 0.0
      %392 = vmatpush.msra.mxu0 0.0
      %393 = vmatpush.msra.mxu0 0.0
      %394 = vmatpush.msra.mxu0 %v377
      %395 = vmatpush.msra.mxu0 %v376
      %396 = vmatpush.msra.mxu0 %v375
      %397 = vmatpush.msra.mxu0 %v374
      %398 = vmatpush.msra.mxu0 %v373
      %399 = vmatpush.msra.mxu0 %v372
      %400 = vmatpush.msra.mxu0 %v371
      %401 = vmatpush.msra.mxu0 %v370
      %402 = vmatmul.f32.gmra.mxu0 %v384
      %v403 = vpop.f32.mrf.mxu0
      %v404 = vadd.f32 %v380, %v403
      %405 = vdwg.mxu0
      %v406 = vld [vmem:[%s5] sm:$0xff]
      %v407 = vld [vmem:[%s5 + $0x8] sm:$0xff]
      %v408 = vld [vmem:[%s5 + $0x10] sm:$0xff]
      %v409 = vld [vmem:[%s5 + $0x18] sm:$0xff]
      %v410 = vld [vmem:[%s6] sm:$0x1]
      %v412 = vperm.slane %v410, 0
      %vm414 = vcmask 261120
      %v416 = vsel %vm414, %v404, 0
      %418 = vmatpush.msra.mxu0 0.0
      %419 = vmatpush.msra.mxu0 0.0
      %420 = vmatpush.msra.mxu0 0.0
      %421 = vmatpush.msra.mxu0 0.0
      %422 = vmatpush.msra.mxu0 0.0
      %423 = vmatpush.msra.mxu0 0.0
      %424 = vmatpush.msra.mxu0 0.0
      %425 = vmatpush.msra.mxu0 0.0
      %426 = vmatpush.msra.mxu0 0.0
      %427 = vmatpush.msra.mxu0 0.0
      %428 = vmatpush.msra.mxu0 0.0
      %429 = vmatpush.msra.mxu0 0.0
      %430 = vmatpush.msra.mxu0 %v409
      %431 = vmatpush.msra.mxu0 %v408
      %432 = vmatpush.msra.mxu0 %v407
      %433 = vmatpush.msra.mxu0 %v406
      %434 = vmatmul.f32.gmra.mxu0 %v416
      %v435 = vpop.f32.mrf.mxu0
      %v436 = vadd.f32 %v412, %v435
      %437 = vdwg.mxu0
      %v438 = vmax.f32 %v436, 0.0
      %v439 = vld [vmem:[%s7] sm:$0xff]
      %v440 = vld [vmem:[%s7 + $0x8] sm:$0xff]
      %v441 = vld [vmem:[%s7 + $0x10] sm:$0xff]
      %v442 = vld [vmem:[%s7 + $0x18] sm:$0xff]
      %v443 = vld [vmem:[%s7 + $0x20] sm:$0xff]
      %v444 = vld [vmem:[%s7 + $0x28] sm:$0xff]
      %v445 = vld [vmem:[%s7 + $0x30] sm:$0xff]
      %v446 = vld [vmem:[%s7 + $0x38] sm:$0xff]
      %v447 = vld [vmem:[%s8] sm:$0x1]
      %v449 = vperm.slane %v447, 0
      %v452 = vsel %vm382, %v438, 0
      %454 = vmatpush.msra.mxu0 0.0
      %455 = vmatpush.msra.mxu0 0.0
      %456 = vmatpush.msra.mxu0 0.0
      %457 = vmatpush.msra.mxu0 0.0
      %458 = vmatpush.msra.mxu0 0.0
      %459 = vmatpush.msra.mxu0 0.0
      %460 = vmatpush.msra.mxu0 0.0
      %461 = vmatpush.msra.mxu0 0.0
      %462 = vmatpush.msra.mxu0 %v446
      %463 = vmatpush.msra.mxu0 %v445
      %464 = vmatpush.msra.mxu0 %v444
      %465 = vmatpush.msra.mxu0 %v443
      %466 = vmatpush.msra.mxu0 %v442
      %467 = vmatpush.msra.mxu0 %v441
      %468 = vmatpush.msra.mxu0 %v440
      %469 = vmatpush.msra.mxu0 %v439
      %470 = vmatmul.f32.gmra.mxu0 %v452
      %v471 = vpop.f32.mrf.mxu0
      %v472 = vadd.f32 %v449, %v471
      %473 = vdwg.mxu0
      %474 = vst [vmem:[%s327] sm:$0xff] %v472
      %p475 = scmp.lt.s32.totalorder %s20, 1
      %s476 = scalar_select %p475, %s20, 1
      %s477 = smul.addr %s476, 8
      %s478 = scalar_lea.vmem %s9, %s477
      // Predicated region
      $region57: #{autoencoder_forward.1} parent=55 // pred_check
        %p479 = pneg %p232
      $region58: #{autoencoder_forward.1} parent=55 // pred_check_branch
        %481 = sbr.rel (%p479) target = $region60
      $region59: #{autoencoder_forward.1} parent=55 // pred_region
        _
      $region60: #{autoencoder_forward.1} parent=55 // pred_fallthru
        _
    $region56: #{autoencoder_forward.1} parent=5 // pred_fallthru
      _
    %p482 = scmp.le.s32.totalorder 2, %s15
    // Predicated region
    $region61: #{autoencoder_forward.1} parent=5 // pred_check
      %p483 = pneg %p482
    $region62: #{autoencoder_forward.1} parent=5 // pred_check_branch
      %485 = sbr.rel (%p483) target = $region64
    $region63: #{autoencoder_forward.1} parent=5 // pred_region
      %s486 = ssub.s32 %s15, 2
      // Predicated region
      $region65: #{autoencoder_forward.1} parent=63 // pred_check
        %p487 = pneg %p238
      $region66: #{autoencoder_forward.1} parent=63 // pred_check_branch
        %489 = sbr.rel (%p487) target = $region68
      $region67: #{autoencoder_forward.1} parent=63 // pred_region
        %p490 = scmp.lt.s32.totalorder %s21, 1
        %s491 = scalar_select %p490, %s21, 1
        %s492 = smul.addr %s491, 8
        %s493 = scalar_lea.vmem %s9, %s492
      $region68: #{autoencoder_forward.1} parent=63 // pred_fallthru
        _
    $region64: #{autoencoder_forward.1} parent=5 // pred_fallthru
      _
  $region6: #{autoencoder_forward.1} parent=0 // loop_footer
    %s19 = sadd.s32 1, %s15
  $region7: #{autoencoder_forward.1} parent=0 // loop_footer_branch
    %14 = sbr.rel target = $region3
  $region8: #{autoencoder_forward.1} parent=0 // loop_exit
    _

</llo_original>
